<compile_context>
chip_gen: v7x
topology: tpu7x:2x2x1
jax: 0.10.0
libtpu: 0.0.40
codegen_flags: <defaults>
</compile_context>

<pallas_src>
import functools

import jax
import jax.numpy as jnp
from jax.experimental import pallas as pl
from jax.experimental.pallas import tpu as pltpu


def _round_up(x, m):
    return ((x + m - 1) // m) * m


def _pick_batch_block(N, S):
    """Images per grid step: widen the MXU lane stream (target ~2048 lanes) while
    keeping >= 2 grid steps when the batch allows it (v7x has 2 TensorCores)."""
    by_lanes = max(1, 2048 // S)
    by_steps = max(1, N // 2)
    return max(1, min(N, by_lanes, by_steps))


def _conv_block_kernel(x_ref, w_ref, b_ref, o_ref, xpad_ref, patch_ref,
                       *, H, W, Nb, Cin, Cin_p, pad_l, mxu_dtype):
    """Fused 3x3 conv (stride 1, pad 1) + LeakyReLU(0.2) for Nb images per grid step.

    x_ref     : (Nb, Cin, S)          raw lane-dense NC(H*W) tile (no HBM-side pad)
    w_ref     : (Cout_p, 9*Cin_p)     weights, tap-major / channel-minor
    b_ref     : (Cout_p, 1)           bias
    o_ref     : (Nb, Cout_p, S)       lane-dense flat-NCHW output
    xpad_ref  : (Cin_p, Spad)  VMEM   zero-haloed, channel-padded staging slab
    patch_ref : (9*Cin_p, Nb*S) VMEM  im2col patch matrix (MXU operand)
    """
    S = H * W

    # Zero halos + padded channel rows every step (cheap; also safe under megacore
    # grid splitting where program_id(0)==0 never fires on the second core).
    xpad_ref[...] = jnp.zeros_like(xpad_ref)

    # (1, S) column masks for the two horizontal taps, hoisted out of all loops.
    col = jax.lax.broadcasted_iota(jnp.int32, (1, S), 1) % W
    left_ok = col >= 1            # output column has a left neighbour in its row
    right_ok = col <= W - 2       # output column has a right neighbour in its row

    # Build the im2col patch matrix straight into VMEM scratch, one tap at a time.
    # Every patch store is sublane-aligned (Cin_p multiple of 8) and lane-aligned
    # (n*S multiple of 128), so only ~2 vregs are live at any point.
    # TODO(synk): if a bundle dump shows the unaligned window slices' lane shifts on
    # the critical path, move the kx=+/-1 shifts to pltpu.roll (XLU slot).
    for n in range(Nb):
        # Drop the raw tile at a 128-aligned lane offset inside the zeroed slab:
        # vertical out-of-range taps then read zeros from the halo automatically.
        xpad_ref[:Cin, pad_l:pad_l + S] = x_ref[n]
        for ky in range(3):
            for kx in range(3):
                off = pad_l - (W + 1) + ky * W + kx        # static lane offset
                win = xpad_ref[:, off:off + S]             # (Cin_p, S)
                if kx == 0:
                    win = jnp.where(left_ok, win, 0.0)
                elif kx == 2:
                    win = jnp.where(right_ok, win, 0.0)
                t = ky * 3 + kx
                patch_ref[t * Cin_p:(t + 1) * Cin_p, n * S:(n + 1) * S] = (
                    win.astype(patch_ref.dtype))

    # One fused MXU contraction over all Nb images: (Cout_p, 9*Cin_p) @ (9*Cin_p, Nb*S).
    w = w_ref[...]
    if mxu_dtype is not None:
        w = w.astype(mxu_dtype)                            # bf16 operands, f32 accum
    acc = jnp.dot(w, patch_ref[...], preferred_element_type=jnp.float32)
    acc = acc + b_ref[...]                                 # (Cout_p, 1) lane-broadcast
    acc = jnp.where(acc > 0, acc, 0.2 * acc)               # LeakyReLU(0.2)

    for n in range(Nb):                                    # lane-aligned 128-mult slices
        o_ref[n] = acc[:, n * S:(n + 1) * S].astype(o_ref.dtype)


@functools.partial(jax.jit, static_argnames=("mxu_dtype",))
def conv_block_forward(x_nchw, weight, bias, *, mxu_dtype=None):
    """ConvBlock forward: Conv2d(3, stride=1, padding=1) + LeakyReLU(0.2).

    x_nchw : (N, Cin, H, W) float32   (PyTorch NCHW convention)
    weight : (Cout, Cin, 3, 3)        (PyTorch OIHW layout)
    bias   : (Cout,)
    mxu_dtype : None (exact f32 path) or jnp.bfloat16 (bf16 MXU operands, f32 accum)
    returns: (N, Cout, H, W)
    """
    N, Cin, H, W = x_nchw.shape
    Cout = weight.shape[0]
    assert weight.shape == (Cout, Cin, 3, 3) and bias.shape == (Cout,), \
        "ConvBlock kernel assumes kernel_size=3 (stride=1, padding=1 are baked in)"
    assert H >= 2 and W >= 2, "halo/mask construction assumes H >= 2 and W >= 2"

    S = H * W
    Cin_p = _round_up(Cin, 8)                 # sublane-align the patch K blocks
    Cout_p = _round_up(Cout, 8)               # clean output sublane tiles
    pad_l = _round_up(W + 1, 128)             # 128-aligned interior -> unmasked stores
    Spad = pad_l + S + (W + 1)

    Nb = _pick_batch_block(N, S)              # images per grid step
    N_p = _round_up(N, Nb)

    patch_dtype = jnp.float32 if mxu_dtype is None else jnp.dtype(mxu_dtype)

    # Free reshape (contiguous trailing merge); NO halo jnp.pad, so no extra HBM
    # round trip of the activations.  Batch is padded only in the rare N % Nb != 0 case.
    x_flat = x_nchw.reshape(N, Cin, S)
    if N_p != N:
        x_flat = jnp.pad(x_flat, ((0, N_p - N), (0, 0), (0, 0)))

    # (Cout, Cin, 3, 3) -> (Cout_p, ky, kx, Cin_p) -> (Cout_p, 9*Cin_p); tap-major /
    # channel-minor to match the patch-matrix row order (tiny, weights only).
    w_t = jnp.transpose(weight, (0, 2, 3, 1))
    w_t = jnp.pad(w_t, ((0, Cout_p - Cout), (0, 0), (0, 0), (0, Cin_p - Cin)))
    w_flat = w_t.reshape(Cout_p, 9 * Cin_p)
    b2d = jnp.pad(bias, (0, Cout_p - Cout)).reshape(Cout_p, 1)

    # VMEM budget: raise the scoped limit only when the tiles need it (matters on
    # v7x: 64 MiB physical / 32 MiB default scoped per TensorCore).
    itm = jnp.dtype(x_nchw.dtype).itemsize
    vmem_est = (2 * Nb * Cin * S * itm                       # double-buffered x blocks
                + 2 * Nb * Cout_p * S * itm                  # double-buffered out blocks
                + 2 * (Cout_p * 9 * Cin_p + Cout_p) * 4      # resident weights + bias
                + Cin_p * Spad * itm                         # padded-x staging scratch
                + 9 * Cin_p * Nb * S * jnp.dtype(patch_dtype).itemsize)  # im2col scratch
    vmem_limit = None
    if vmem_est > 30 * 1024 * 1024:
        vmem_limit = int(min(vmem_est * 5 // 4, 60 * 1024 * 1024))

    kernel = functools.partial(
        _conv_block_kernel, H=H, W=W, Nb=Nb, Cin=Cin, Cin_p=Cin_p,
        pad_l=pad_l, mxu_dtype=mxu_dtype)

    out_flat = pl.pallas_call(
        kernel,
        out_shape=jax.ShapeDtypeStruct((N_p, Cout_p, S), x_nchw.dtype),
        grid_spec=pltpu.PrefetchScalarGridSpec(
            num_scalar_prefetch=0,
            grid=(N_p // Nb,),
            in_specs=[
                pl.BlockSpec((Nb, Cin, S), lambda g: (g, 0, 0)),
                pl.BlockSpec((Cout_p, 9 * Cin_p), lambda g: (0, 0)),
                pl.BlockSpec((Cout_p, 1), lambda g: (0, 0)),
            ],
            out_specs=pl.BlockSpec((Nb, Cout_p, S), lambda g: (g, 0, 0)),
            scratch_shapes=[
                pltpu.VMEM((Cin_p, Spad), x_nchw.dtype),        # zero-haloed x slab
                pltpu.VMEM((9 * Cin_p, Nb * S), patch_dtype),   # im2col patch matrix
            ],
        ),
        compiler_params=pltpu.CompilerParams(
            dimension_semantics=("parallel",),    # batch-block axis -> both TCs on v7x
            vmem_limit_bytes=vmem_limit,
        ),
    )(x_flat, w_flat, b2d)

    # Output is already channel-major (lane-dense NC(H*W)): free reshape back to NCHW;
    # the slices are no-ops at the default config (N_p==N, Cout_p==Cout).
    return out_flat[:N, :Cout].reshape(N, Cout, H, W)


def _reference(x_nchw, weight, bias):
    """Pure-JAX reference (nn.Conv2d(3, stride=1, pad=1) + LeakyReLU(0.2))."""
    out = jax.lax.conv_general_dilated(
        x_nchw, weight,
        window_strides=(1, 1),
        padding=((1, 1), (1, 1)),
        dimension_numbers=("NCHW", "OIHW", "NCHW"),
    )
    out = out + bias[None, :, None, None]
    return jnp.where(out > 0, out, 0.2 * out)


if __name__ == "__main__":
    # ConvBlock(ndims=2, in_channels=4, out_channels=8, stride=1)
    N, Cin, H, W = 4, 4, 16, 16
    Cout = 8

    key = jax.random.PRNGKey(0)
    kx, kw, kb = jax.random.split(key, 3)

    x = jax.random.normal(kx, (N, Cin, H, W), dtype=jnp.float32)
    fan_in = Cin * 3 * 3
    bound = float(1.0 / (fan_in ** 0.5))
    weight = jax.random.uniform(kw, (Cout, Cin, 3, 3), jnp.float32, -bound, bound)
    bias = jax.random.uniform(kb, (Cout,), jnp.float32, -bound, bound)

    ref = _reference(x, weight, bias)

    # Exact f32 path (tight tolerance vs the f32 reference).
    out = jax.block_until_ready(conv_block_forward(x, weight, bias))
    assert out.shape == (N, Cout, H, W)
    assert jnp.allclose(out, ref, atol=1e-5, rtol=1e-5), "f32 kernel mismatch vs reference"

    # bf16-MXU path (biggest win on v5e's bf16-native MXU); f32 accumulation, looser tol.
    out_bf16 = jax.block_until_ready(
        conv_block_forward(x, weight, bias, mxu_dtype=jnp.bfloat16))
    assert jnp.allclose(out_bf16, ref, atol=3e-2, rtol=3e-2), "bf16 kernel mismatch vs reference"

    print("KERNEL_OK")
</pallas_src>

<mosaic_0001>
module attributes {stable_mosaic.version = 11 : i64} {
  func.func @_conv_block_kernel(%arg0: i32, %arg1: memref<2x4x256xf32, #tpu.memory_space<vmem>>, %arg2: memref<8x72xf32, #tpu.memory_space<vmem>>, %arg3: memref<8x1xf32, #tpu.memory_space<vmem>>, %arg4: memref<2x8x256xf32, #tpu.memory_space<vmem>>, %arg5: memref<8x401xf32, #tpu.memory_space<vmem>>, %arg6: memref<72x512xf32, #tpu.memory_space<vmem>>) attributes {dimension_semantics = [#tpu.dimension_semantics<parallel>], iteration_bounds = array<i64: 2>, scalar_prefetch = 0 : i64, scratch_operands = 2 : i64, tpu.core_type = #tpu.core_type<tc>, window_params = [{transform_indices = @transform_0, window_bounds = array<i64: 2, 4, 256>}, {pipeline_mode = #tpu.pipeline_mode<synchronous>, transform_indices = @transform_1, window_bounds = array<i64: 8, 72>}, {pipeline_mode = #tpu.pipeline_mode<synchronous>, transform_indices = @transform_2, window_bounds = array<i64: 8, 1>}, {transform_indices = @transform_3, window_bounds = array<i64: 2, 8, 256>}]} {
    %cst = arith.constant 0.000000e+00 : f32
    %0 = vector.broadcast %cst : f32 to vector<8x401xf32>
    %c0 = arith.constant 0 : index
    %c0_0 = arith.constant 0 : index
    %1 = vector.load %arg5[%c0, %c0_0] : memref<8x401xf32, #tpu.memory_space<vmem>>, vector<8x401xf32>
    tpu.vector_store %arg5[%c0, %c0_0], %0 {strides = array<i32>} : memref<8x401xf32, #tpu.memory_space<vmem>>, vector<8x401xf32>,
    %2 = tpu.iota {dimensions = array<i32: 1>} : vector<1x256xi32>
    %c16_i32 = arith.constant 16 : i32
    %c0_i32 = arith.constant 0 : i32
    %3 = arith.cmpi eq, %c16_i32, %c0_i32 : i32
    %c1_i32 = arith.constant 1 : i32
    %4 = arith.select %3, %c1_i32, %c16_i32 : i32
    %5 = vector.broadcast %4 : i32 to vector<1x256xi32>
    %6 = arith.remsi %2, %5 : vector<1x256xi32>
    %c0_i32_1 = arith.constant 0 : i32
    %7 = vector.broadcast %c0_i32_1 : i32 to vector<1x256xi32>
    %8 = arith.cmpi ne, %6, %7 : vector<1x256xi32>
    %c0_i32_2 = arith.constant 0 : i32
    %9 = vector.broadcast %c0_i32_2 : i32 to vector<1x256xi32>
    %10 = arith.cmpi slt, %6, %9 : vector<1x256xi32>
    %c0_i32_3 = arith.constant 0 : i32
    %11 = arith.cmpi slt, %4, %c0_i32_3 : i32
    %12 = vector.broadcast %11 : i1 to vector<1x256xi1>
    %13 = vector.broadcast %12 : vector<1x256xi1> to vector<1x256xi1>
    %14 = arith.xori %10, %13 : vector<1x256xi1>
    %15 = arith.andi %14, %8 : vector<1x256xi1>
    %16 = vector.broadcast %4 : i32 to vector<1x256xi32>
    %17 = arith.addi %6, %16 : vector<1x256xi32>
    %18 = arith.select %15, %17, %6 : vector<1x256xi1>, vector<1x256xi32>
    %c1_i32_4 = arith.constant 1 : i32
    %19 = vector.broadcast %c1_i32_4 : i32 to vector<1x256xi32>
    %20 = arith.cmpi sge, %18, %19 : vector<1x256xi32>
    %c14_i32 = arith.constant 14 : i32
    %21 = vector.broadcast %c14_i32 : i32 to vector<1x256xi32>
    %22 = arith.cmpi sle, %18, %21 : vector<1x256xi32>
    %c0_5 = arith.constant 0 : index
    %c0_6 = arith.constant 0 : index
    %c0_7 = arith.constant 0 : index
    %23 = vector.load %arg1[%c0_5, %c0_6, %c0_7] : memref<2x4x256xf32, #tpu.memory_space<vmem>>, vector<1x4x256xf32>
    %24 = vector.shape_cast %23 : vector<1x4x256xf32> to vector<4x256xf32>
    %c0_8 = arith.constant 0 : index
    %c128 = arith.constant 128 : index
    %25 = vector.load %arg5[%c0_8, %c128] : memref<8x401xf32, #tpu.memory_space<vmem>>, vector<4x256xf32>
    tpu.vector_store %arg5[%c0_8, %c128], %24 {strides = array<i32>} : memref<8x401xf32, #tpu.memory_space<vmem>>, vector<4x256xf32>,
    %c0_9 = arith.constant 0 : index
    %c111 = arith.constant 111 : index
    %26 = vector.load %arg5[%c0_9, %c111] : memref<8x401xf32, #tpu.memory_space<vmem>>, vector<8x256xf32>
    %cst_10 = arith.constant 0.000000e+00 : f32
    %27 = vector.shape_cast %20 : vector<1x256xi1> to vector<1x256xi1>
    %28 = vector.broadcast %27 : vector<1x256xi1> to vector<8x256xi1>
    %29 = vector.broadcast %cst_10 : f32 to vector<8x256xf32>
    %30 = arith.select %28, %26, %29 : vector<8x256xi1>, vector<8x256xf32>
    %c0_11 = arith.constant 0 : index
    %c0_12 = arith.constant 0 : index
    %31 = vector.load %arg6[%c0_11, %c0_12] : memref<72x512xf32, #tpu.memory_space<vmem>>, vector<8x256xf32>
    tpu.vector_store %arg6[%c0_11, %c0_12], %30 {strides = array<i32>} : memref<72x512xf32, #tpu.memory_space<vmem>>, vector<8x256xf32>,
    %c0_13 = arith.constant 0 : index
    %c112 = arith.constant 112 : index
    %32 = vector.load %arg5[%c0_13, %c112] : memref<8x401xf32, #tpu.memory_space<vmem>>, vector<8x256xf32>
    %c8 = arith.constant 8 : index
    %c0_14 = arith.constant 0 : index
    %33 = vector.load %arg6[%c8, %c0_14] : memref<72x512xf32, #tpu.memory_space<vmem>>, vector<8x256xf32>
    tpu.vector_store %arg6[%c8, %c0_14], %32 {strides = array<i32>} : memref<72x512xf32, #tpu.memory_space<vmem>>, vector<8x256xf32>,
    %c0_15 = arith.constant 0 : index
    %c113 = arith.constant 113 : index
    %34 = vector.load %arg5[%c0_15, %c113] : memref<8x401xf32, #tpu.memory_space<vmem>>, vector<8x256xf32>
    %cst_16 = arith.constant 0.000000e+00 : f32
    %35 = vector.shape_cast %22 : vector<1x256xi1> to vector<1x256xi1>
    %36 = vector.broadcast %35 : vector<1x256xi1> to vector<8x256xi1>
    %37 = vector.broadcast %cst_16 : f32 to vector<8x256xf32>
    %38 = arith.select %36, %34, %37 : vector<8x256xi1>, vector<8x256xf32>
    %c16 = arith.constant 16 : index
    %c0_17 = arith.constant 0 : index
    %39 = vector.load %arg6[%c16, %c0_17] : memref<72x512xf32, #tpu.memory_space<vmem>>, vector<8x256xf32>
    tpu.vector_store %arg6[%c16, %c0_17], %38 {strides = array<i32>} : memref<72x512xf32, #tpu.memory_space<vmem>>, vector<8x256xf32>,
    %c0_18 = arith.constant 0 : index
    %c127 = arith.constant 127 : index
    %40 = vector.load %arg5[%c0_18, %c127] : memref<8x401xf32, #tpu.memory_space<vmem>>, vector<8x256xf32>
    %cst_19 = arith.constant 0.000000e+00 : f32
    %41 = vector.shape_cast %20 : vector<1x256xi1> to vector<1x256xi1>
    %42 = vector.broadcast %41 : vector<1x256xi1> to vector<8x256xi1>
    %43 = vector.broadcast %cst_19 : f32 to vector<8x256xf32>
    %44 = arith.select %42, %40, %43 : vector<8x256xi1>, vector<8x256xf32>
    %c24 = arith.constant 24 : index
    %c0_20 = arith.constant 0 : index
    %45 = vector.load %arg6[%c24, %c0_20] : memref<72x512xf32, #tpu.memory_space<vmem>>, vector<8x256xf32>
    tpu.vector_store %arg6[%c24, %c0_20], %44 {strides = array<i32>} : memref<72x512xf32, #tpu.memory_space<vmem>>, vector<8x256xf32>,
    %c0_21 = arith.constant 0 : index
    %c128_22 = arith.constant 128 : index
    %46 = vector.load %arg5[%c0_21, %c128_22] : memref<8x401xf32, #tpu.memory_space<vmem>>, vector<8x256xf32>
    %c32 = arith.constant 32 : index
    %c0_23 = arith.constant 0 : index
    %47 = vector.load %arg6[%c32, %c0_23] : memref<72x512xf32, #tpu.memory_space<vmem>>, vector<8x256xf32>
    tpu.vector_store %arg6[%c32, %c0_23], %46 {strides = array<i32>} : memref<72x512xf32, #tpu.memory_space<vmem>>, vector<8x256xf32>,
    %c0_24 = arith.constant 0 : index
    %c129 = arith.constant 129 : index
    %48 = vector.load %arg5[%c0_24, %c129] : memref<8x401xf32, #tpu.memory_space<vmem>>, vector<8x256xf32>
    %cst_25 = arith.constant 0.000000e+00 : f32
    %49 = vector.shape_cast %22 : vector<1x256xi1> to vector<1x256xi1>
    %50 = vector.broadcast %49 : vector<1x256xi1> to vector<8x256xi1>
    %51 = vector.broadcast %cst_25 : f32 to vector<8x256xf32>
    %52 = arith.select %50, %48, %51 : vector<8x256xi1>, vector<8x256xf32>
    %c40 = arith.constant 40 : index
    %c0_26 = arith.constant 0 : index
    %53 = vector.load %arg6[%c40, %c0_26] : memref<72x512xf32, #tpu.memory_space<vmem>>, vector<8x256xf32>
    tpu.vector_store %arg6[%c40, %c0_26], %52 {strides = array<i32>} : memref<72x512xf32, #tpu.memory_space<vmem>>, vector<8x256xf32>,
    %c0_27 = arith.constant 0 : index
    %c143 = arith.constant 143 : index
    %54 = vector.load %arg5[%c0_27, %c143] : memref<8x401xf32, #tpu.memory_space<vmem>>, vector<8x256xf32>
    %cst_28 = arith.constant 0.000000e+00 : f32
    %55 = vector.shape_cast %20 : vector<1x256xi1> to vector<1x256xi1>
    %56 = vector.broadcast %55 : vector<1x256xi1> to vector<8x256xi1>
    %57 = vector.broadcast %cst_28 : f32 to vector<8x256xf32>
    %58 = arith.select %56, %54, %57 : vector<8x256xi1>, vector<8x256xf32>
    %c48 = arith.constant 48 : index
    %c0_29 = arith.constant 0 : index
    %59 = vector.load %arg6[%c48, %c0_29] : memref<72x512xf32, #tpu.memory_space<vmem>>, vector<8x256xf32>
    tpu.vector_store %arg6[%c48, %c0_29], %58 {strides = array<i32>} : memref<72x512xf32, #tpu.memory_space<vmem>>, vector<8x256xf32>,
    %c0_30 = arith.constant 0 : index
    %c144 = arith.constant 144 : index
    %60 = vector.load %arg5[%c0_30, %c144] : memref<8x401xf32, #tpu.memory_space<vmem>>, vector<8x256xf32>
    %c56 = arith.constant 56 : index
    %c0_31 = arith.constant 0 : index
    %61 = vector.load %arg6[%c56, %c0_31] : memref<72x512xf32, #tpu.memory_space<vmem>>, vector<8x256xf32>
    tpu.vector_store %arg6[%c56, %c0_31], %60 {strides = array<i32>} : memref<72x512xf32, #tpu.memory_space<vmem>>, vector<8x256xf32>,
    %c0_32 = arith.constant 0 : index
    %c145 = arith.constant 145 : index
    %62 = vector.load %arg5[%c0_32, %c145] : memref<8x401xf32, #tpu.memory_space<vmem>>, vector<8x256xf32>
    %cst_33 = arith.constant 0.000000e+00 : f32
    %63 = vector.shape_cast %22 : vector<1x256xi1> to vector<1x256xi1>
    %64 = vector.broadcast %63 : vector<1x256xi1> to vector<8x256xi1>
    %65 = vector.broadcast %cst_33 : f32 to vector<8x256xf32>
    %66 = arith.select %64, %62, %65 : vector<8x256xi1>, vector<8x256xf32>
    %c64 = arith.constant 64 : index
    %c0_34 = arith.constant 0 : index
    %67 = vector.load %arg6[%c64, %c0_34] : memref<72x512xf32, #tpu.memory_space<vmem>>, vector<8x256xf32>
    tpu.vector_store %arg6[%c64, %c0_34], %66 {strides = array<i32>} : memref<72x512xf32, #tpu.memory_space<vmem>>, vector<8x256xf32>,
    %c1 = arith.constant 1 : index
    %c0_35 = arith.constant 0 : index
    %c0_36 = arith.constant 0 : index
    %68 = vector.load %arg1[%c1, %c0_35, %c0_36] : memref<2x4x256xf32, #tpu.memory_space<vmem>>, vector<1x4x256xf32>
    %69 = vector.shape_cast %68 : vector<1x4x256xf32> to vector<4x256xf32>
    %c0_37 = arith.constant 0 : index
    %c128_38 = arith.constant 128 : index
    %70 = vector.load %arg5[%c0_37, %c128_38] : memref<8x401xf32, #tpu.memory_space<vmem>>, vector<4x256xf32>
    tpu.vector_store %arg5[%c0_37, %c128_38], %69 {strides = array<i32>} : memref<8x401xf32, #tpu.memory_space<vmem>>, vector<4x256xf32>,
    %c0_39 = arith.constant 0 : index
    %c111_40 = arith.constant 111 : index
    %71 = vector.load %arg5[%c0_39, %c111_40] : memref<8x401xf32, #tpu.memory_space<vmem>>, vector<8x256xf32>
    %cst_41 = arith.constant 0.000000e+00 : f32
    %72 = vector.shape_cast %20 : vector<1x256xi1> to vector<1x256xi1>
    %73 = vector.broadcast %72 : vector<1x256xi1> to vector<8x256xi1>
    %74 = vector.broadcast %cst_41 : f32 to vector<8x256xf32>
    %75 = arith.select %73, %71, %74 : vector<8x256xi1>, vector<8x256xf32>
    %c0_42 = arith.constant 0 : index
    %c256 = arith.constant 256 : index
    %76 = vector.load %arg6[%c0_42, %c256] : memref<72x512xf32, #tpu.memory_space<vmem>>, vector<8x256xf32>
    tpu.vector_store %arg6[%c0_42, %c256], %75 {strides = array<i32>} : memref<72x512xf32, #tpu.memory_space<vmem>>, vector<8x256xf32>,
    %c0_43 = arith.constant 0 : index
    %c112_44 = arith.constant 112 : index
    %77 = vector.load %arg5[%c0_43, %c112_44] : memref<8x401xf32, #tpu.memory_space<vmem>>, vector<8x256xf32>
    %c8_45 = arith.constant 8 : index
    %c256_46 = arith.constant 256 : index
    %78 = vector.load %arg6[%c8_45, %c256_46] : memref<72x512xf32, #tpu.memory_space<vmem>>, vector<8x256xf32>
    tpu.vector_store %arg6[%c8_45, %c256_46], %77 {strides = array<i32>} : memref<72x512xf32, #tpu.memory_space<vmem>>, vector<8x256xf32>,
    %c0_47 = arith.constant 0 : index
    %c113_48 = arith.constant 113 : index
    %79 = vector.load %arg5[%c0_47, %c113_48] : memref<8x401xf32, #tpu.memory_space<vmem>>, vector<8x256xf32>
    %cst_49 = arith.constant 0.000000e+00 : f32
    %80 = vector.shape_cast %22 : vector<1x256xi1> to vector<1x256xi1>
    %81 = vector.broadcast %80 : vector<1x256xi1> to vector<8x256xi1>
    %82 = vector.broadcast %cst_49 : f32 to vector<8x256xf32>
    %83 = arith.select %81, %79, %82 : vector<8x256xi1>, vector<8x256xf32>
    %c16_50 = arith.constant 16 : index
    %c256_51 = arith.constant 256 : index
    %84 = vector.load %arg6[%c16_50, %c256_51] : memref<72x512xf32, #tpu.memory_space<vmem>>, vector<8x256xf32>
    tpu.vector_store %arg6[%c16_50, %c256_51], %83 {strides = array<i32>} : memref<72x512xf32, #tpu.memory_space<vmem>>, vector<8x256xf32>,
    %c0_52 = arith.constant 0 : index
    %c127_53 = arith.constant 127 : index
    %85 = vector.load %arg5[%c0_52, %c127_53] : memref<8x401xf32, #tpu.memory_space<vmem>>, vector<8x256xf32>
    %cst_54 = arith.constant 0.000000e+00 : f32
    %86 = vector.shape_cast %20 : vector<1x256xi1> to vector<1x256xi1>
    %87 = vector.broadcast %86 : vector<1x256xi1> to vector<8x256xi1>
    %88 = vector.broadcast %cst_54 : f32 to vector<8x256xf32>
    %89 = arith.select %87, %85, %88 : vector<8x256xi1>, vector<8x256xf32>
    %c24_55 = arith.constant 24 : index
    %c256_56 = arith.constant 256 : index
    %90 = vector.load %arg6[%c24_55, %c256_56] : memref<72x512xf32, #tpu.memory_space<vmem>>, vector<8x256xf32>
    tpu.vector_store %arg6[%c24_55, %c256_56], %89 {strides = array<i32>} : memref<72x512xf32, #tpu.memory_space<vmem>>, vector<8x256xf32>,
    %c0_57 = arith.constant 0 : index
    %c128_58 = arith.constant 128 : index
    %91 = vector.load %arg5[%c0_57, %c128_58] : memref<8x401xf32, #tpu.memory_space<vmem>>, vector<8x256xf32>
    %c32_59 = arith.constant 32 : index
    %c256_60 = arith.constant 256 : index
    %92 = vector.load %arg6[%c32_59, %c256_60] : memref<72x512xf32, #tpu.memory_space<vmem>>, vector<8x256xf32>
    tpu.vector_store %arg6[%c32_59, %c256_60], %91 {strides = array<i32>} : memref<72x512xf32, #tpu.memory_space<vmem>>, vector<8x256xf32>,
    %c0_61 = arith.constant 0 : index
    %c129_62 = arith.constant 129 : index
    %93 = vector.load %arg5[%c0_61, %c129_62] : memref<8x401xf32, #tpu.memory_space<vmem>>, vector<8x256xf32>
    %cst_63 = arith.constant 0.000000e+00 : f32
    %94 = vector.shape_cast %22 : vector<1x256xi1> to vector<1x256xi1>
    %95 = vector.broadcast %94 : vector<1x256xi1> to vector<8x256xi1>
    %96 = vector.broadcast %cst_63 : f32 to vector<8x256xf32>
    %97 = arith.select %95, %93, %96 : vector<8x256xi1>, vector<8x256xf32>
    %c40_64 = arith.constant 40 : index
    %c256_65 = arith.constant 256 : index
    %98 = vector.load %arg6[%c40_64, %c256_65] : memref<72x512xf32, #tpu.memory_space<vmem>>, vector<8x256xf32>
    tpu.vector_store %arg6[%c40_64, %c256_65], %97 {strides = array<i32>} : memref<72x512xf32, #tpu.memory_space<vmem>>, vector<8x256xf32>,
    %c0_66 = arith.constant 0 : index
    %c143_67 = arith.constant 143 : index
    %99 = vector.load %arg5[%c0_66, %c143_67] : memref<8x401xf32, #tpu.memory_space<vmem>>, vector<8x256xf32>
    %cst_68 = arith.constant 0.000000e+00 : f32
    %100 = vector.shape_cast %20 : vector<1x256xi1> to vector<1x256xi1>
    %101 = vector.broadcast %100 : vector<1x256xi1> to vector<8x256xi1>
    %102 = vector.broadcast %cst_68 : f32 to vector<8x256xf32>
    %103 = arith.select %101, %99, %102 : vector<8x256xi1>, vector<8x256xf32>
    %c48_69 = arith.constant 48 : index
    %c256_70 = arith.constant 256 : index
    %104 = vector.load %arg6[%c48_69, %c256_70] : memref<72x512xf32, #tpu.memory_space<vmem>>, vector<8x256xf32>
    tpu.vector_store %arg6[%c48_69, %c256_70], %103 {strides = array<i32>} : memref<72x512xf32, #tpu.memory_space<vmem>>, vector<8x256xf32>,
    %c0_71 = arith.constant 0 : index
    %c144_72 = arith.constant 144 : index
    %105 = vector.load %arg5[%c0_71, %c144_72] : memref<8x401xf32, #tpu.memory_space<vmem>>, vector<8x256xf32>
    %c56_73 = arith.constant 56 : index
    %c256_74 = arith.constant 256 : index
    %106 = vector.load %arg6[%c56_73, %c256_74] : memref<72x512xf32, #tpu.memory_space<vmem>>, vector<8x256xf32>
    tpu.vector_store %arg6[%c56_73, %c256_74], %105 {strides = array<i32>} : memref<72x512xf32, #tpu.memory_space<vmem>>, vector<8x256xf32>,
    %c0_75 = arith.constant 0 : index
    %c145_76 = arith.constant 145 : index
    %107 = vector.load %arg5[%c0_75, %c145_76] : memref<8x401xf32, #tpu.memory_space<vmem>>, vector<8x256xf32>
    %cst_77 = arith.constant 0.000000e+00 : f32
    %108 = vector.shape_cast %22 : vector<1x256xi1> to vector<1x256xi1>
    %109 = vector.broadcast %108 : vector<1x256xi1> to vector<8x256xi1>
    %110 = vector.broadcast %cst_77 : f32 to vector<8x256xf32>
    %111 = arith.select %109, %107, %110 : vector<8x256xi1>, vector<8x256xf32>
    %c64_78 = arith.constant 64 : index
    %c256_79 = arith.constant 256 : index
    %112 = vector.load %arg6[%c64_78, %c256_79] : memref<72x512xf32, #tpu.memory_space<vmem>>, vector<8x256xf32>
    tpu.vector_store %arg6[%c64_78, %c256_79], %111 {strides = array<i32>} : memref<72x512xf32, #tpu.memory_space<vmem>>, vector<8x256xf32>,
    %c0_80 = arith.constant 0 : index
    %c0_81 = arith.constant 0 : index
    %113 = vector.load %arg2[%c0_80, %c0_81] : memref<8x72xf32, #tpu.memory_space<vmem>>, vector<8x72xf32>
    %c0_82 = arith.constant 0 : index
    %c0_83 = arith.constant 0 : index
    %114 = vector.load %arg6[%c0_82, %c0_83] : memref<72x512xf32, #tpu.memory_space<vmem>>, vector<72x512xf32>
    %cst_84 = arith.constant dense<0.000000e+00> : vector<8x512xf32>
    %115 = tpu.matmul %113, %114, %cst_84 {dimension_numbers = #tpu.dot_dimension_numbers<[1], [0], [0], [1], [0, 0, 1, 1], [], []>} : vector<8x72xf32>, vector<72x512xf32>, vector<8x512xf32> -> vector<8x512xf32>
    %c0_85 = arith.constant 0 : index
    %c0_86 = arith.constant 0 : index
    %116 = vector.load %arg3[%c0_85, %c0_86] : memref<8x1xf32, #tpu.memory_space<vmem>>, vector<8x1xf32>
    %117 = vector.broadcast %116 : vector<8x1xf32> to vector<8x512xf32>
    %118 = arith.addf %115, %117 : vector<8x512xf32>
    %cst_87 = arith.constant 0.000000e+00 : f32
    %119 = vector.broadcast %cst_87 : f32 to vector<8x512xf32>
    %120 = arith.cmpf ogt, %118, %119 : vector<8x512xf32>
    %cst_88 = arith.constant 2.000000e-01 : f32
    %121 = vector.broadcast %cst_88 : f32 to vector<8x512xf32>
    %122 = arith.mulf %121, %118 : vector<8x512xf32>
    %123 = arith.select %120, %118, %122 : vector<8x512xi1>, vector<8x512xf32>
    %124 = vector.extract_strided_slice %123 {offsets = [0, 0], sizes = [8, 256], strides = [1, 1]} : vector<8x512xf32> to vector<8x256xf32>
    %c0_89 = arith.constant 0 : index
    %c0_90 = arith.constant 0 : index
    %c0_91 = arith.constant 0 : index
    %125 = vector.load %arg4[%c0_89, %c0_90, %c0_91] : memref<2x8x256xf32, #tpu.memory_space<vmem>>, vector<1x8x256xf32>
    %126 = vector.shape_cast %125 : vector<1x8x256xf32> to vector<8x256xf32>
    %127 = vector.shape_cast %124 : vector<8x256xf32> to vector<1x8x256xf32>
    tpu.vector_store %arg4[%c0_89, %c0_90, %c0_91], %127 {strides = array<i32>} : memref<2x8x256xf32, #tpu.memory_space<vmem>>, vector<1x8x256xf32>,
    %128 = vector.extract_strided_slice %123 {offsets = [0, 256], sizes = [8, 256], strides = [1, 1]} : vector<8x512xf32> to vector<8x256xf32>
    %c1_92 = arith.constant 1 : index
    %c0_93 = arith.constant 0 : index
    %c0_94 = arith.constant 0 : index
    %129 = vector.load %arg4[%c1_92, %c0_93, %c0_94] : memref<2x8x256xf32, #tpu.memory_space<vmem>>, vector<1x8x256xf32>
    %130 = vector.shape_cast %129 : vector<1x8x256xf32> to vector<8x256xf32>
    %131 = vector.shape_cast %128 : vector<8x256xf32> to vector<1x8x256xf32>
    tpu.vector_store %arg4[%c1_92, %c0_93, %c0_94], %131 {strides = array<i32>} : memref<2x8x256xf32, #tpu.memory_space<vmem>>, vector<1x8x256xf32>,
    return
  }
  func.func @transform_0(%arg0: i32) -> (i32, i32, i32) {
    %c0_i32 = arith.constant 0 : i32
    %c0_i32_0 = arith.constant 0 : i32
    %c0_i32_1 = arith.constant 0 : i32
    return %arg0, %c0_i32, %c0_i32_0 : i32, i32, i32
  }
  func.func @transform_1(%arg0: i32) -> (i32, i32) {
    %c0_i32 = arith.constant 0 : i32
    %c0_i32_0 = arith.constant 0 : i32
    %c0_i32_1 = arith.constant 0 : i32
    return %c0_i32, %c0_i32_0 : i32, i32
  }
  func.func @transform_2(%arg0: i32) -> (i32, i32) {
    %c0_i32 = arith.constant 0 : i32
    %c0_i32_0 = arith.constant 0 : i32
    %c0_i32_1 = arith.constant 0 : i32
    return %c0_i32, %c0_i32_0 : i32, i32
  }
  func.func @transform_3(%arg0: i32) -> (i32, i32, i32) {
    %c0_i32 = arith.constant 0 : i32
    %c0_i32_0 = arith.constant 0 : i32
    %c0_i32_1 = arith.constant 0 : i32
    return %arg0, %c0_i32, %c0_i32_0 : i32, i32, i32
  }
}

</mosaic_0001>

<llo_original>
// kernel: conv_block_forward.1
$region0: #{conv_block_forward.1}
  #allocation0 [shape = 'u32[]', space=smem, size = 0x4, offset = 0x4, fixed_abs, tag = 'smem constant byte address 0x4 - core index']
  #allocation1 [shape = 'u32[144,128]{1,0:T(1,128)}', space=vmem, size = 0x12000, scoped, tag = 'internal scratch']
  #allocation2 [shape = 'f32[8,401]{1,0:T(8,128)}', space=vmem, size = 0x4000, scoped, tag = 'scratch operand']
  #allocation3 [shape = 'f32[72,512]{1,0:T(8,128)}', space=vmem, size = 0x24000, scoped, tag = 'scratch operand']
  %s0 = inlined_call_operand.vmem [shape: f32[4,4,256], index: 0, kind: input, shape index: {}]
  %s1 = inlined_call_operand.vmem [shape: f32[8,72], index: 1, kind: input, shape index: {}]
  %s2 = inlined_call_operand.vmem [shape: f32[8,1], index: 2, kind: input, shape index: {}]
  %s3 = inlined_call_operand.vmem [shape: f32[4,8,256], index: 3, kind: output, shape index: {}]
  %s4 = sld [smem:[#allocation0]]
  $region45: #{conv_block_forward.1} parent=0
    _
  %s6 = ssub.s32 1, %s4
  %s7 = scalar_select 0, %s6, %s4
  loop: start=0, step=1, limit=4
  $region2: #{conv_block_forward.1} parent=0 // loop_pre_header
    _
  $region3: #{conv_block_forward.1} parent=0 // loop_header
    %s9 = sphi 0, %s13
    %p10 = scmp.ge.s32.totalorder %s9, 4
    %s19 = sphi 0, %s21
    %s22 = sphi 0, %s19
    %s23 = sphi 0, %s22
    %s39 = sphi 0, %s23
    %s43 = sphi 0, %s43
    %s45 = sphi 0, %s43
    %s46 = sphi 0, %s45
    %s60 = sphi 0, %s46
    %s64 = sphi 0, %s64
    %s66 = sphi 0, %s64
    %s67 = sphi 0, %s66
    %s81 = sphi 0, %s67
    %s87 = sphi 0, %s89
    %s90 = sphi 0, %s87
    %s91 = sphi 0, %s90
    %s107 = sphi 0, %s91
  $region4: #{conv_block_forward.1} parent=0 // loop_header_branch
    %12 = sbr.rel (%p10) target = $region8
  $region5: #{conv_block_forward.1} parent=0 // loop_body
    %s14 = ssub.s32 %s9, 1
    %s15 = ssub.s32 %s9, 2
    %s16 = sadd.s32 %s9, 1
    %s17 = ssub.s32 %s9, %s16
    %p18 = scmp.eq.s32.totalorder %s17, 0
    %s20 = sadd.s32 %s19, 1
    %s21 = scalar_select %p18, %s19, %s20
    %p24 = pneg %p18
    %p25 = scmp.eq.s32.totalorder %s9, 1
    %p26 = por %p24, %p25
    %p27 = scmp.ne.s32.totalorder %s19, %s22
    %p28 = scmp.eq.s32.totalorder %s9, 0
    %p29 = por %p27, %p28
    %p30 = scmp.ne.s32.totalorder %s19, %s22
    %p31 = scmp.eq.s32.totalorder %s14, 1
    %p32 = por %p30, %p31
    %p33 = scmp.ne.s32.totalorder %s22, %s23
    %p34 = scmp.eq.s32.totalorder %s14, 0
    %p35 = por %p33, %p34
    %p36 = scmp.ne.s32.totalorder %s22, %s23
    %p37 = scmp.eq.s32.totalorder %s15, 1
    %p38 = por %p36, %p37
    %p40 = scmp.ne.s32.totalorder %s23, %s39
    %p41 = scmp.eq.s32.totalorder %s15, 0
    %p42 = por %p40, %p41
    %s44 = sadd.s32 %s43, 1
    %p47 = scmp.eq.s32.totalorder %s9, 1
    %p48 = scmp.ne.s32.totalorder %s43, %s45
    %p49 = scmp.eq.s32.totalorder %s9, 0
    %p50 = por %p48, %p49
    %p51 = scmp.ne.s32.totalorder %s43, %s45
    %p52 = scmp.eq.s32.totalorder %s14, 1
    %p53 = por %p51, %p52
    %p54 = scmp.ne.s32.totalorder %s45, %s46
    %p55 = scmp.eq.s32.totalorder %s14, 0
    %p56 = por %p54, %p55
    %p57 = scmp.ne.s32.totalorder %s45, %s46
    %p58 = scmp.eq.s32.totalorder %s15, 1
    %p59 = por %p57, %p58
    %p61 = scmp.ne.s32.totalorder %s46, %s60
    %p62 = scmp.eq.s32.totalorder %s15, 0
    %p63 = por %p61, %p62
    %s65 = sadd.s32 %s64, 1
    %p68 = scmp.eq.s32.totalorder %s9, 1
    %p69 = scmp.ne.s32.totalorder %s64, %s66
    %p70 = scmp.eq.s32.totalorder %s9, 0
    %p71 = por %p69, %p70
    %p72 = scmp.ne.s32.totalorder %s64, %s66
    %p73 = scmp.eq.s32.totalorder %s14, 1
    %p74 = por %p72, %p73
    %p75 = scmp.ne.s32.totalorder %s66, %s67
    %p76 = scmp.eq.s32.totalorder %s14, 0
    %p77 = por %p75, %p76
    %p78 = scmp.ne.s32.totalorder %s66, %s67
    %p79 = scmp.eq.s32.totalorder %s15, 1
    %p80 = por %p78, %p79
    %p82 = scmp.ne.s32.totalorder %s67, %s81
    %p83 = scmp.eq.s32.totalorder %s15, 0
    %p84 = por %p82, %p83
    %s85 = ssub.s32 %s9, %s16
    %p86 = scmp.eq.s32.totalorder %s85, 0
    %s88 = sadd.s32 %s87, 1
    %s89 = scalar_select %p86, %s87, %s88
    %p92 = pneg %p86
    %p93 = scmp.eq.s32.totalorder %s9, 1
    %p94 = por %p92, %p93
    %p95 = scmp.ne.s32.totalorder %s87, %s90
    %p96 = scmp.eq.s32.totalorder %s9, 0
    %p97 = por %p95, %p96
    %p98 = scmp.ne.s32.totalorder %s87, %s90
    %p99 = scmp.eq.s32.totalorder %s14, 1
    %p100 = por %p98, %p99
    %p101 = scmp.ne.s32.totalorder %s90, %s91
    %p102 = scmp.eq.s32.totalorder %s14, 0
    %p103 = por %p101, %p102
    %p104 = scmp.ne.s32.totalorder %s90, %s91
    %p105 = scmp.eq.s32.totalorder %s15, 1
    %p106 = por %p104, %p105
    %p108 = scmp.ne.s32.totalorder %s91, %s107
    %p109 = scmp.eq.s32.totalorder %s15, 0
    %p110 = por %p108, %p109
    %p111 = scmp.le.s32.totalorder 1, %s9
    %p112 = scmp.lt.s32.totalorder %s9, 3
    %p113 = pnand %p111, %p112
    %p114 = pneg %p113
    // Predicated region
    $region9: #{conv_block_forward.1} parent=5 // pred_check
      _
    $region10: #{conv_block_forward.1} parent=5 // pred_check_branch
      %116 = sbr.rel (%p113) target = $region12
    $region11: #{conv_block_forward.1} parent=5 // pred_region
      %s117 = ssub.s32 %s9, 1
      // Predicated region
      $region13: #{conv_block_forward.1} parent=11 // pred_check
        %p118 = pneg %p56
      $region14: #{conv_block_forward.1} parent=11 // pred_check_branch
        %120 = sbr.rel (%p118) target = $region16
      $region15: #{conv_block_forward.1} parent=11 // pred_region
        _
      $region16: #{conv_block_forward.1} parent=11 // pred_fallthru
        _
      // Predicated region
      $region17: #{conv_block_forward.1} parent=11 // pred_check
        %p121 = pneg %p77
      $region18: #{conv_block_forward.1} parent=11 // pred_check_branch
        %123 = sbr.rel (%p121) target = $region20
      $region19: #{conv_block_forward.1} parent=11 // pred_region
        _
      $region20: #{conv_block_forward.1} parent=11 // pred_fallthru
        _
    $region12: #{conv_block_forward.1} parent=5 // pred_fallthru
      _
    %p124 = scmp.lt.s32.totalorder %s9, 2
    // Predicated region
    $region21: #{conv_block_forward.1} parent=5 // pred_check
      %p125 = pneg %p124
    $region22: #{conv_block_forward.1} parent=5 // pred_check_branch
      %127 = sbr.rel (%p125) target = $region24
    $region23: #{conv_block_forward.1} parent=5 // pred_region
      // Predicated region
      $region25: #{conv_block_forward.1} parent=23 // pred_check
        %p128 = pneg %p29
      $region26: #{conv_block_forward.1} parent=23 // pred_check_branch
        %130 = sbr.rel (%p128) target = $region28
      $region27: #{conv_block_forward.1} parent=23 // pred_region
        %s131 = smul.u32 2, %s9
        %p132 = scmp.lt.s32.totalorder %s131, 3
        %s133 = scalar_select %p132, %s131, 3
        %s134 = smul.addr %s133, 2
        %s135 = smul.addr %s134, 4
        %s136 = scalar_lea.vmem %s0, %s135
        %s137 = smul.u32 2, %s9
      $region28: #{conv_block_forward.1} parent=23 // pred_fallthru
        _
    $region24: #{conv_block_forward.1} parent=5 // pred_fallthru
      _
    %p138 = scmp.le.s32.totalorder 1, %s9
    %p139 = scmp.lt.s32.totalorder %s9, 3
    %p140 = pnand %p138, %p139
    %p141 = pneg %p140
    // Predicated region
    $region29: #{conv_block_forward.1} parent=5 // pred_check
      _
    $region30: #{conv_block_forward.1} parent=5 // pred_check_branch
      %143 = sbr.rel (%p140) target = $region32
    $region31: #{conv_block_forward.1} parent=5 // pred_region
      %s144 = ssub.s32 %s9, 1
      %s145 = smul.u32 2, %s14
      %p146 = scmp.lt.s32.totalorder %s145, 3
      %s147 = scalar_select %p146, %s145, 3
      %s148 = smul.addr %s147, 2
      %s149 = smul.addr %s148, 4
      %s150 = scalar_lea.vmem %s0, %s149
      %p151 = pneg %p35
      %p152 = pneg %p32
      %p153 = pneg %p56
      %p154 = pneg %p53
      %p155 = pneg %p77
      %p156 = pneg %p74
      %p157 = pneg %p103
      %p158 = pneg %p100
      %s159 = smul.u32 2, %s14
      %p160 = scmp.lt.s32.totalorder %s159, 3
      %s161 = scalar_select %p160, %s159, 3
      %s162 = smul.addr %s161, 2
      %s163 = smul.addr %s162, 8
      %s164 = scalar_lea.vmem %s3, %s163
      %s165 = smul.u32 2, %s14
      %p166 = scmp.lt.s32.totalorder %s165, 3
      %s167 = scalar_select %p166, %s165, 3
      %s168 = smul.addr %s167, 2
      %s169 = smul.addr %s168, 4
      %s170 = scalar_lea.vmem %s0, %s169
      %s171 = smul.u32 2, %s14
      %s172 = smul.u32 2, %s14
      %p173 = scmp.lt.s32.totalorder %s172, 3
      %s174 = scalar_select %p173, %s172, 3
      %s175 = smul.addr %s174, 2
      %s176 = smul.addr %s175, 8
      %s177 = scalar_lea.vmem %s3, %s176
      %s178 = smul.u32 2, %s14
      %179 = vst [vmem:[#allocation2] sm:$0xff] 0.0
      %180 = vst [vmem:[#allocation2 + $0x8] sm:$0xff] 0.0
      %181 = vst [vmem:[#allocation2 + $0x10] sm:$0xff] 0.0
      %vm182 = vcmask 138240
      %183 = vst.msk [vmem:[#allocation2 + $0x18] sm:$0xff] %vm182, 0.0
      %v184 = vlaneseq
      %v185 = vand.u32 %v184, 127
      %v186 = vadd.s32 %v185, 128
      %vm187 = vcmp.lt.s32.totalorder %v185, 0
      %v188 = vsub.s32 0, %v185
      %v189 = vsel %vm187, %v188, %v185
      %v190 = vshrl.u32 %v189, 4
      %v191 = vand.u32 %v189, 15
      %v192 = vsub.s32 0, %v191
      %v193 = vsel %vm187, %v192, %v191
      %vm194 = vcmp.lt.s32.totalorder %v186, 0
      %v195 = vsub.s32 0, %v186
      %v196 = vsel %vm194, %v195, %v186
      %v197 = vshrl.u32 %v196, 4
      %v198 = vand.u32 %v196, 15
      %v199 = vsub.s32 0, %v198
      %v200 = vsel %vm194, %v199, %v198
      %vm201 = vcmp.ne.s32.totalorder %v193, 0
      %vm202 = vcmp.ne.s32.totalorder %v200, 0
      %vm203 = vcmp.lt.s32.totalorder %v193, 0
      %vm204 = vcmp.lt.s32.totalorder %v200, 0
      %vm205 = vmand %vm203, %vm201
      %vm206 = vmand %vm204, %vm202
      %v207 = vadd.s32 %v193, 16
      %v208 = vadd.s32 %v200, 16
      %v209 = vsel %vm205, %v207, %v193
      %v210 = vsel %vm206, %v208, %v200
      %vm211 = vcmp.ge.s32.totalorder %v209, 1
      %vm212 = vcmp.ge.s32.totalorder %v210, 1
      %vm213 = vcmp.le.s32.totalorder %v209, 14
      %vm214 = vcmp.le.s32.totalorder %v210, 14
      %v215 = vld [vmem:[%s170] sm:$0xff]
      %v217 = vcombine.high %v215, %v215
      %219 = vst [vmem:[#allocation2 + $0x8] sm:$0xf] %v215
      %220 = vst [vmem:[#allocation2 + $0x10] sm:$0xf] %v217
      %v221 = vld [vmem:[#allocation2] sm:$0xff]
      %v222 = vld [vmem:[#allocation2 + $0x8] sm:$0xff]
      %v223 = vld [vmem:[#allocation2 + $0x10] sm:$0xff]
      %v224 = vsel %vm211, 1, 0
      %v225 = vsel %vm212, 1, 0
      %vm226 = vcmp.eq.s32.totalorder %v224, 1
      %vm227 = vcmp.eq.s32.totalorder %v225, 1
      %231 = vrot.lane.b32.xlu0 %v221, 17
      %v232 = vpop.permute.xlu0 %231
      %233 = vrot.lane.b32.xlu0 %v222, 17
      %v234 = vpop.permute.xlu0 %233
      %235 = vrot.lane.b32.xlu0 %v223, 17
      %v236 = vpop.permute.xlu0 %235
      %v237 = vsel %vm182, %v232, %v234
      %v238 = vsel %vm182, %v234, %v236
      %v241 = vsel %vm226, %v237, 0.0
      %v242 = vsel %vm227, %v238, 0.0
      %243 = vst [vmem:[#allocation3] sm:$0xff] %v241
      %244 = vst [vmem:[#allocation3 + $0x8] sm:$0xff] %v242
      %v245 = vld [vmem:[#allocation2] sm:$0xff]
      %v246 = vld [vmem:[#allocation2 + $0x8] sm:$0xff]
      %v247 = vld [vmem:[#allocation2 + $0x10] sm:$0xff]
      %251 = vrot.lane.b32.xlu0 %v245, 16
      %v252 = vpop.permute.xlu0 %251
      %253 = vrot.lane.b32.xlu0 %v246, 16
      %v254 = vpop.permute.xlu0 %253
      %255 = vrot.lane.b32.xlu0 %v247, 16
      %v256 = vpop.permute.xlu0 %255
      %vm257 = vcmask 130048
      %v258 = vsel %vm257, %v252, %v254
      %v259 = vsel %vm257, %v254, %v256
      %262 = vst [vmem:[#allocation3 + $0x20] sm:$0xff] %v258
      %263 = vst [vmem:[#allocation3 + $0x28] sm:$0xff] %v259
      %v264 = vld [vmem:[#allocation2] sm:$0xff]
      %v265 = vld [vmem:[#allocation2 + $0x8] sm:$0xff]
      %v266 = vld [vmem:[#allocation2 + $0x10] sm:$0xff]
      %v267 = vsel %vm213, 1, 0
      %v268 = vsel %vm214, 1, 0
      %vm269 = vcmp.eq.s32.totalorder %v267, 1
      %vm270 = vcmp.eq.s32.totalorder %v268, 1
      %274 = vrot.lane.b32.xlu0 %v264, 15
      %v275 = vpop.permute.xlu0 %274
      %276 = vrot.lane.b32.xlu0 %v265, 15
      %v277 = vpop.permute.xlu0 %276
      %278 = vrot.lane.b32.xlu0 %v266, 15
      %v279 = vpop.permute.xlu0 %278
      %vm280 = vcmask 121856
      %v281 = vsel %vm280, %v275, %v277
      %v282 = vsel %vm280, %v277, %v279
      %v285 = vsel %vm269, %v281, 0.0
      %v286 = vsel %vm270, %v282, 0.0
      %287 = vst [vmem:[#allocation3 + $0x40] sm:$0xff] %v285
      %288 = vst [vmem:[#allocation3 + $0x48] sm:$0xff] %v286
      %v289 = vld [vmem:[#allocation2] sm:$0xff]
      %v290 = vld [vmem:[#allocation2 + $0x8] sm:$0xff]
      %v291 = vld [vmem:[#allocation2 + $0x10] sm:$0xff]
      %295 = vrot.lane.b32.xlu0 %v289, 1
      %v296 = vpop.permute.xlu0 %295
      %297 = vrot.lane.b32.xlu0 %v290, 1
      %v298 = vpop.permute.xlu0 %297
      %299 = vrot.lane.b32.xlu0 %v291, 1
      %v300 = vpop.permute.xlu0 %299
      %vm301 = vcmask 7168
      %v302 = vsel %vm301, %v296, %v298
      %v303 = vsel %vm301, %v298, %v300
      %v306 = vsel %vm226, %v302, 0.0
      %v307 = vsel %vm227, %v303, 0.0
      %308 = vst [vmem:[#allocation3 + $0x60] sm:$0xff] %v306
      %309 = vst [vmem:[#allocation3 + $0x68] sm:$0xff] %v307
      %v310 = vld [vmem:[#allocation2 + $0x8] sm:$0xff]
      %v311 = vld [vmem:[#allocation2 + $0x10] sm:$0xff]
      %312 = vst [vmem:[#allocation3 + $0x80] sm:$0xff] %v310
      %313 = vst [vmem:[#allocation3 + $0x88] sm:$0xff] %v311
      %v314 = vld [vmem:[#allocation2 + $0x8] sm:$0xff]
      %v315 = vld [vmem:[#allocation2 + $0x10] sm:$0xff]
      %v316 = vld [vmem:[#allocation2 + $0x18] sm:$0xff]
      %320 = vrot.lane.b32.xlu0 %v314, 127
      %v321 = vpop.permute.xlu0 %320
      %322 = vrot.lane.b32.xlu0 %v315, 127
      %v323 = vpop.permute.xlu0 %322
      %324 = vrot.lane.b32.xlu0 %v316, 127
      %v325 = vpop.permute.xlu0 %324
      %vm326 = vcmask 1039360
      %v327 = vsel %vm326, %v321, %v323
      %v328 = vsel %vm326, %v323, %v325
      %v331 = vsel %vm269, %v327, 0.0
      %v332 = vsel %vm270, %v328, 0.0
      %333 = vst [vmem:[#allocation3 + $0xa0] sm:$0xff] %v331
      %334 = vst [vmem:[#allocation3 + $0xa8] sm:$0xff] %v332
      %v335 = vld [vmem:[#allocation2 + $0x8] sm:$0xff]
      %v336 = vld [vmem:[#allocation2 + $0x10] sm:$0xff]
      %v337 = vld [vmem:[#allocation2 + $0x18] sm:$0xff]
      %341 = vrot.lane.b32.xlu0 %v335, 113
      %v342 = vpop.permute.xlu0 %341
      %343 = vrot.lane.b32.xlu0 %v336, 113
      %v344 = vpop.permute.xlu0 %343
      %345 = vrot.lane.b32.xlu0 %v337, 113
      %v346 = vpop.permute.xlu0 %345
      %vm347 = vcmask 924672
      %v348 = vsel %vm347, %v342, %v344
      %v349 = vsel %vm347, %v344, %v346
      %v352 = vsel %vm226, %v348, 0.0
      %v353 = vsel %vm227, %v349, 0.0
      %354 = vst [vmem:[#allocation3 + $0xc0] sm:$0xff] %v352
      %355 = vst [vmem:[#allocation3 + $0xc8] sm:$0xff] %v353
      %v356 = vld [vmem:[#allocation2 + $0x8] sm:$0xff]
      %v357 = vld [vmem:[#allocation2 + $0x10] sm:$0xff]
      %v358 = vld [vmem:[#allocation2 + $0x18] sm:$0xff]
      %362 = vrot.lane.b32.xlu0 %v356, 112
      %v363 = vpop.permute.xlu0 %362
      %364 = vrot.lane.b32.xlu0 %v357, 112
      %v365 = vpop.permute.xlu0 %364
      %366 = vrot.lane.b32.xlu0 %v358, 112
      %v367 = vpop.permute.xlu0 %366
      %vm368 = vcmask 916480
      %v369 = vsel %vm368, %v363, %v365
      %v370 = vsel %vm368, %v365, %v367
      %373 = vst [vmem:[#allocation3 + $0xe0] sm:$0xff] %v369
      %374 = vst [vmem:[#allocation3 + $0xe8] sm:$0xff] %v370
      %v375 = vld [vmem:[#allocation2 + $0x8] sm:$0xff]
      %v376 = vld [vmem:[#allocation2 + $0x10] sm:$0xff]
      %v377 = vld [vmem:[#allocation2 + $0x18] sm:$0xff]
      %381 = vrot.lane.b32.xlu0 %v375, 111
      %v382 = vpop.permute.xlu0 %381
      %383 = vrot.lane.b32.xlu0 %v376, 111
      %v384 = vpop.permute.xlu0 %383
      %385 = vrot.lane.b32.xlu0 %v377, 111
      %v386 = vpop.permute.xlu0 %385
      %vm387 = vcmask 908288
      %v388 = vsel %vm387, %v382, %v384
      %v389 = vsel %vm387, %v384, %v386
      %v392 = vsel %vm269, %v388, 0.0
      %v393 = vsel %vm270, %v389, 0.0
      %394 = vst [vmem:[#allocation3 + $0x100] sm:$0xff] %v392
      %395 = vst [vmem:[#allocation3 + $0x108] sm:$0xff] %v393
      %s396 = scalar_lea.vmem %s170, 8
      %v397 = vld [vmem:[%s396] sm:$0xff]
      %v399 = vcombine.high %v397, %v397
      %401 = vst [vmem:[#allocation2 + $0x8] sm:$0xf] %v397
      %402 = vst [vmem:[#allocation2 + $0x10] sm:$0xf] %v399
      %v403 = vld [vmem:[#allocation2] sm:$0xff]
      %v404 = vld [vmem:[#allocation2 + $0x8] sm:$0xff]
      %v405 = vld [vmem:[#allocation2 + $0x10] sm:$0xff]
      %409 = vrot.lane.b32.xlu0 %v403, 17
      %v410 = vpop.permute.xlu0 %409
      %411 = vrot.lane.b32.xlu0 %v404, 17
      %v412 = vpop.permute.xlu0 %411
      %413 = vrot.lane.b32.xlu0 %v405, 17
      %v414 = vpop.permute.xlu0 %413
      %v415 = vsel %vm182, %v410, %v412
      %v416 = vsel %vm182, %v412, %v414
      %v419 = vsel %vm226, %v415, 0.0
      %v420 = vsel %vm227, %v416, 0.0
      %421 = vst [vmem:[#allocation3 + $0x10] sm:$0xff] %v419
      %422 = vst [vmem:[#allocation3 + $0x18] sm:$0xff] %v420
      %v423 = vld [vmem:[#allocation2] sm:$0xff]
      %v424 = vld [vmem:[#allocation2 + $0x8] sm:$0xff]
      %v425 = vld [vmem:[#allocation2 + $0x10] sm:$0xff]
      %429 = vrot.lane.b32.xlu0 %v423, 16
      %v430 = vpop.permute.xlu0 %429
      %431 = vrot.lane.b32.xlu0 %v424, 16
      %v432 = vpop.permute.xlu0 %431
      %433 = vrot.lane.b32.xlu0 %v425, 16
      %v434 = vpop.permute.xlu0 %433
      %v435 = vsel %vm257, %v430, %v432
      %v436 = vsel %vm257, %v432, %v434
      %439 = vst [vmem:[#allocation3 + $0x30] sm:$0xff] %v435
      %440 = vst [vmem:[#allocation3 + $0x38] sm:$0xff] %v436
      %v441 = vld [vmem:[#allocation2] sm:$0xff]
      %v442 = vld [vmem:[#allocation2 + $0x8] sm:$0xff]
      %v443 = vld [vmem:[#allocation2 + $0x10] sm:$0xff]
      %447 = vrot.lane.b32.xlu0 %v441, 15
      %v448 = vpop.permute.xlu0 %447
      %449 = vrot.lane.b32.xlu0 %v442, 15
      %v450 = vpop.permute.xlu0 %449
      %451 = vrot.lane.b32.xlu0 %v443, 15
      %v452 = vpop.permute.xlu0 %451
      %v453 = vsel %vm280, %v448, %v450
      %v454 = vsel %vm280, %v450, %v452
      %v457 = vsel %vm269, %v453, 0.0
      %v458 = vsel %vm270, %v454, 0.0
      %459 = vst [vmem:[#allocation3 + $0x50] sm:$0xff] %v457
      %460 = vst [vmem:[#allocation3 + $0x58] sm:$0xff] %v458
      %v461 = vld [vmem:[#allocation2] sm:$0xff]
      %v462 = vld [vmem:[#allocation2 + $0x8] sm:$0xff]
      %v463 = vld [vmem:[#allocation2 + $0x10] sm:$0xff]
      %467 = vrot.lane.b32.xlu0 %v461, 1
      %v468 = vpop.permute.xlu0 %467
      %469 = vrot.lane.b32.xlu0 %v462, 1
      %v470 = vpop.permute.xlu0 %469
      %471 = vrot.lane.b32.xlu0 %v463, 1
      %v472 = vpop.permute.xlu0 %471
      %v473 = vsel %vm301, %v468, %v470
      %v474 = vsel %vm301, %v470, %v472
      %v477 = vsel %vm226, %v473, 0.0
      %v478 = vsel %vm227, %v474, 0.0
      %479 = vst [vmem:[#allocation3 + $0x70] sm:$0xff] %v477
      %480 = vst [vmem:[#allocation3 + $0x78] sm:$0xff] %v478
      %v481 = vld [vmem:[#allocation2 + $0x8] sm:$0xff]
      %v482 = vld [vmem:[#allocation2 + $0x10] sm:$0xff]
      %483 = vst [vmem:[#allocation3 + $0x90] sm:$0xff] %v481
      %484 = vst [vmem:[#allocation3 + $0x98] sm:$0xff] %v482
      %v485 = vld [vmem:[#allocation2 + $0x8] sm:$0xff]
      %v486 = vld [vmem:[#allocation2 + $0x10] sm:$0xff]
      %v487 = vld [vmem:[#allocation2 + $0x18] sm:$0xff]
      %491 = vrot.lane.b32.xlu0 %v485, 127
      %v492 = vpop.permute.xlu0 %491
      %493 = vrot.lane.b32.xlu0 %v486, 127
      %v494 = vpop.permute.xlu0 %493
      %495 = vrot.lane.b32.xlu0 %v487, 127
      %v496 = vpop.permute.xlu0 %495
      %v497 = vsel %vm326, %v492, %v494
      %v498 = vsel %vm326, %v494, %v496
      %v501 = vsel %vm269, %v497, 0.0
      %v502 = vsel %vm270, %v498, 0.0
      %503 = vst [vmem:[#allocation3 + $0xb0] sm:$0xff] %v501
      %504 = vst [vmem:[#allocation3 + $0xb8] sm:$0xff] %v502
      %v505 = vld [vmem:[#allocation2 + $0x8] sm:$0xff]
      %v506 = vld [vmem:[#allocation2 + $0x10] sm:$0xff]
      %v507 = vld [vmem:[#allocation2 + $0x18] sm:$0xff]
      %511 = vrot.lane.b32.xlu0 %v505, 113
      %v512 = vpop.permute.xlu0 %511
      %513 = vrot.lane.b32.xlu0 %v506, 113
      %v514 = vpop.permute.xlu0 %513
      %515 = vrot.lane.b32.xlu0 %v507, 113
      %v516 = vpop.permute.xlu0 %515
      %v517 = vsel %vm347, %v512, %v514
      %v518 = vsel %vm347, %v514, %v516
      %v521 = vsel %vm226, %v517, 0.0
      %v522 = vsel %vm227, %v518, 0.0
      %523 = vst [vmem:[#allocation3 + $0xd0] sm:$0xff] %v521
      %524 = vst [vmem:[#allocation3 + $0xd8] sm:$0xff] %v522
      %v525 = vld [vmem:[#allocation2 + $0x8] sm:$0xff]
      %v526 = vld [vmem:[#allocation2 + $0x10] sm:$0xff]
      %v527 = vld [vmem:[#allocation2 + $0x18] sm:$0xff]
      %531 = vrot.lane.b32.xlu0 %v525, 112
      %v532 = vpop.permute.xlu0 %531
      %533 = vrot.lane.b32.xlu0 %v526, 112
      %v534 = vpop.permute.xlu0 %533
      %535 = vrot.lane.b32.xlu0 %v527, 112
      %v536 = vpop.permute.xlu0 %535
      %v537 = vsel %vm368, %v532, %v534
      %v538 = vsel %vm368, %v534, %v536
      %541 = vst [vmem:[#allocation3 + $0xf0] sm:$0xff] %v537
      %542 = vst [vmem:[#allocation3 + $0xf8] sm:$0xff] %v538
      %v543 = vld [vmem:[#allocation2 + $0x8] sm:$0xff]
      %v544 = vld [vmem:[#allocation2 + $0x10] sm:$0xff]
      %v545 = vld [vmem:[#allocation2 + $0x18] sm:$0xff]
      %549 = vrot.lane.b32.xlu0 %v543, 111
      %v550 = vpop.permute.xlu0 %549
      %551 = vrot.lane.b32.xlu0 %v544, 111
      %v552 = vpop.permute.xlu0 %551
      %553 = vrot.lane.b32.xlu0 %v545, 111
      %v554 = vpop.permute.xlu0 %553
      %v555 = vsel %vm387, %v550, %v552
      %v556 = vsel %vm387, %v552, %v554
      %v559 = vsel %vm269, %v555, 0.0
      %v560 = vsel %vm270, %v556, 0.0
      %561 = vst [vmem:[#allocation3 + $0x110] sm:$0xff] %v559
      %562 = vst [vmem:[#allocation3 + $0x118] sm:$0xff] %v560
      %v563 = vld [vmem:[%s1] sm:$0xff]
      %v564 = vld [vmem:[#allocation3] sm:$0xff]
      %v565 = vld [vmem:[#allocation3 + $0x8] sm:$0xff]
      %v566 = vld [vmem:[#allocation3 + $0x10] sm:$0xff]
      %v567 = vld [vmem:[#allocation3 + $0x18] sm:$0xff]
      %v568 = vld [vmem:[#allocation3 + $0x20] sm:$0xff]
      %v569 = vld [vmem:[#allocation3 + $0x28] sm:$0xff]
      %v570 = vld [vmem:[#allocation3 + $0x30] sm:$0xff]
      %v571 = vld [vmem:[#allocation3 + $0x38] sm:$0xff]
      %v572 = vld [vmem:[#allocation3 + $0x40] sm:$0xff]
      %v573 = vld [vmem:[#allocation3 + $0x48] sm:$0xff]
      %v574 = vld [vmem:[#allocation3 + $0x50] sm:$0xff]
      %v575 = vld [vmem:[#allocation3 + $0x58] sm:$0xff]
      %v576 = vld [vmem:[#allocation3 + $0x60] sm:$0xff]
      %v577 = vld [vmem:[#allocation3 + $0x68] sm:$0xff]
      %v578 = vld [vmem:[#allocation3 + $0x70] sm:$0xff]
      %v579 = vld [vmem:[#allocation3 + $0x78] sm:$0xff]
      %v580 = vld [vmem:[#allocation3 + $0x80] sm:$0xff]
      %v581 = vld [vmem:[#allocation3 + $0x88] sm:$0xff]
      %v582 = vld [vmem:[#allocation3 + $0x90] sm:$0xff]
      %v583 = vld [vmem:[#allocation3 + $0x98] sm:$0xff]
      %v584 = vld [vmem:[#allocation3 + $0xa0] sm:$0xff]
      %v585 = vld [vmem:[#allocation3 + $0xa8] sm:$0xff]
      %v586 = vld [vmem:[#allocation3 + $0xb0] sm:$0xff]
      %v587 = vld [vmem:[#allocation3 + $0xb8] sm:$0xff]
      %v588 = vld [vmem:[#allocation3 + $0xc0] sm:$0xff]
      %v589 = vld [vmem:[#allocation3 + $0xc8] sm:$0xff]
      %v590 = vld [vmem:[#allocation3 + $0xd0] sm:$0xff]
      %v591 = vld [vmem:[#allocation3 + $0xd8] sm:$0xff]
      %v592 = vld [vmem:[#allocation3 + $0xe0] sm:$0xff]
      %v593 = vld [vmem:[#allocation3 + $0xe8] sm:$0xff]
      %v594 = vld [vmem:[#allocation3 + $0xf0] sm:$0xff]
      %v595 = vld [vmem:[#allocation3 + $0xf8] sm:$0xff]
      %v596 = vld [vmem:[#allocation3 + $0x100] sm:$0xff]
      %v597 = vld [vmem:[#allocation3 + $0x108] sm:$0xff]
      %v598 = vld [vmem:[#allocation3 + $0x110] sm:$0xff]
      %v599 = vld [vmem:[#allocation3 + $0x118] sm:$0xff]
      %v600 = vld [vmem:[%s2] sm:$0xff]
      %602 = vset.pattern.permute.xlu0 0
      %603 = vperm.xlu0 %602, %v600
      %v604 = vpop.permute.xlu0 %603
      %vm606 = vcmask 588800
      %v608 = vsel %vm606, %v563, 0
      %610 = vmatprep.subr.mxu0 %v565
      %611 = vmatpush1.msra.mxu0 %v564
      %612 = vmatprep.subr.mxu0 %v569
      %613 = vmatpush1.msra.mxu0 %v568
      %614 = vmatprep.subr.mxu0 %v573
      %615 = vmatpush1.msra.mxu0 %v572
      %616 = vmatprep.subr.mxu0 %v577
      %617 = vmatpush1.msra.mxu0 %v576
      %618 = vmatprep.subr.mxu0 %v581
      %619 = vmatpush1.msra.mxu0 %v580
      %620 = vmatprep.subr.mxu0 %v585
      %621 = vmatpush1.msra.mxu0 %v584
      %622 = vmatprep.subr.mxu0 %v589
      %623 = vmatpush1.msra.mxu0 %v588
      %624 = vmatprep.subr.mxu0 %v593
      %625 = vmatpush1.msra.mxu0 %v592
      %626 = vmatprep.subr.mxu0 %v597
      %627 = vmatpush1.msra.mxu0 %v596
      %628 = vmatprep.subr.mxu0 0.0
      %629 = vmatpush1.msra.mxu0 0.0
      %630 = vmatprep.subr.mxu0 0.0
      %631 = vmatpush1.msra.mxu0 0.0
      %632 = vmatprep.subr.mxu0 0.0
      %633 = vmatpush1.msra.mxu0 0.0
      %634 = vmatprep.subr.mxu0 0.0
      %635 = vmatpush1.msra.mxu0 0.0
      %636 = vmatprep.subr.mxu0 0.0
      %637 = vmatpush1.msra.mxu0 0.0
      %638 = vmatprep.subr.mxu0 0.0
      %639 = vmatpush1.msra.mxu0 0.0
      %640 = vmatprep.subr.mxu0 0.0
      %641 = vmatpush1.msra.mxu0 0.0
      %642 = vmatprep.subr.mxu0 0.0
      %643 = vmatpush1.msra.mxu0 0.0
      %644 = vmatprep.subr.mxu0 0.0
      %645 = vmatpush1.msra.mxu0 0.0
      %646 = vmatprep.subr.mxu0 0.0
      %647 = vmatpush1.msra.mxu0 0.0
      %648 = vmatprep.subr.mxu0 0.0
      %649 = vmatpush1.msra.mxu0 0.0
      %650 = vmatprep.subr.mxu0 0.0
      %651 = vmatpush1.msra.mxu0 0.0
      %652 = vmatprep.subr.mxu0 0.0
      %653 = vmatpush1.msra.mxu0 0.0
      %654 = vmatprep.subr.mxu0 0.0
      %655 = vmatpush1.msra.mxu0 0.0
      %656 = vmatprep.subr.mxu0 0.0
      %657 = vmatpush1.msra.mxu0 0.0
      %658 = vmatprep.subr.mxu0 0.0
      %659 = vmatpush1.msra.mxu0 0.0
      %660 = vmatprep.subr.mxu0 0.0
      %661 = vmatpush1.msra.mxu0 0.0
      %662 = vmatprep.subr.mxu0 0.0
      %663 = vmatpush1.msra.mxu0 0.0
      %664 = vmatprep.subr.mxu0 0.0
      %665 = vmatpush1.msra.mxu0 0.0
      %666 = vmatprep.subr.mxu0 0.0
      %667 = vmatpush1.msra.mxu0 0.0
      %668 = vmatprep.subr.mxu0 0.0
      %669 = vmatpush1.msra.mxu0 0.0
      %670 = vmatprep.subr.mxu0 0.0
      %671 = vmatpush1.msra.mxu0 0.0
      %672 = vmatprep.subr.mxu0 0.0
      %673 = vmatpush1.msra.mxu0 0.0
      %674 = vmatprep.mubr.f32.mxu0 0.0
      %675 = vmatmul.mubr.f32.gmra.mrb[0].mxu0 %v608
      %v676 = vpop.f32.mrb[0].mxu0
      %v677 = vadd.f32 %v604, %v676
      %v678 = vpop.f32.mrb[0].mxu0
      %v679 = vadd.f32 %v604, %v678
      %680 = vdwg.mxu0
      %681 = vmatprep.subr.mxu0 %v567
      %682 = vmatpush1.msra.mxu0 %v566
      %683 = vmatprep.subr.mxu0 %v571
      %684 = vmatpush1.msra.mxu0 %v570
      %685 = vmatprep.subr.mxu0 %v575
      %686 = vmatpush1.msra.mxu0 %v574
      %687 = vmatprep.subr.mxu0 %v579
      %688 = vmatpush1.msra.mxu0 %v578
      %689 = vmatprep.subr.mxu0 %v583
      %690 = vmatpush1.msra.mxu0 %v582
      %691 = vmatprep.subr.mxu0 %v587
      %692 = vmatpush1.msra.mxu0 %v586
      %693 = vmatprep.subr.mxu0 %v591
      %694 = vmatpush1.msra.mxu0 %v590
      %695 = vmatprep.subr.mxu0 %v595
      %696 = vmatpush1.msra.mxu0 %v594
      %697 = vmatprep.subr.mxu0 %v599
      %698 = vmatpush1.msra.mxu0 %v598
      %699 = vmatprep.subr.mxu0 0.0
      %700 = vmatpush1.msra.mxu0 0.0
      %701 = vmatprep.subr.mxu0 0.0
      %702 = vmatpush1.msra.mxu0 0.0
      %703 = vmatprep.subr.mxu0 0.0
      %704 = vmatpush1.msra.mxu0 0.0
      %705 = vmatprep.subr.mxu0 0.0
      %706 = vmatpush1.msra.mxu0 0.0
      %707 = vmatprep.subr.mxu0 0.0
      %708 = vmatpush1.msra.mxu0 0.0
      %709 = vmatprep.subr.mxu0 0.0
      %710 = vmatpush1.msra.mxu0 0.0
      %711 = vmatprep.subr.mxu0 0.0
      %712 = vmatpush1.msra.mxu0 0.0
      %713 = vmatprep.subr.mxu0 0.0
      %714 = vmatpush1.msra.mxu0 0.0
      %715 = vmatprep.subr.mxu0 0.0
      %716 = vmatpush1.msra.mxu0 0.0
      %717 = vmatprep.subr.mxu0 0.0
      %718 = vmatpush1.msra.mxu0 0.0
      %719 = vmatprep.subr.mxu0 0.0
      %720 = vmatpush1.msra.mxu0 0.0
      %721 = vmatprep.subr.mxu0 0.0
      %722 = vmatpush1.msra.mxu0 0.0
      %723 = vmatprep.subr.mxu0 0.0
      %724 = vmatpush1.msra.mxu0 0.0
      %725 = vmatprep.subr.mxu0 0.0
      %726 = vmatpush1.msra.mxu0 0.0
      %727 = vmatprep.subr.mxu0 0.0
      %728 = vmatpush1.msra.mxu0 0.0
      %729 = vmatprep.subr.mxu0 0.0
      %730 = vmatpush1.msra.mxu0 0.0
      %731 = vmatprep.subr.mxu0 0.0
      %732 = vmatpush1.msra.mxu0 0.0
      %733 = vmatprep.subr.mxu0 0.0
      %734 = vmatpush1.msra.mxu0 0.0
      %735 = vmatprep.subr.mxu0 0.0
      %736 = vmatpush1.msra.mxu0 0.0
      %737 = vmatprep.subr.mxu0 0.0
      %738 = vmatpush1.msra.mxu0 0.0
      %739 = vmatprep.subr.mxu0 0.0
      %740 = vmatpush1.msra.mxu0 0.0
      %741 = vmatprep.subr.mxu0 0.0
      %742 = vmatpush1.msra.mxu0 0.0
      %743 = vmatprep.subr.mxu0 0.0
      %744 = vmatpush1.msra.mxu0 0.0
      %745 = vmatprep.mubr.f32.mxu0 0.0
      %746 = vmatmul.mubr.f32.gmra.mrb[0].mxu0 %v608
      %v747 = vpop.f32.mrb[0].mxu0
      %v748 = vadd.f32 %v604, %v747
      %v749 = vpop.f32.mrb[0].mxu0
      %v750 = vadd.f32 %v604, %v749
      %751 = vdwg.mxu0
      %vm752 = vcmp.gt.f32.partialorder %v677, 0.0
      %vm753 = vcmp.gt.f32.partialorder %v679, 0.0
      %vm754 = vcmp.gt.f32.partialorder %v748, 0.0
      %vm755 = vcmp.gt.f32.partialorder %v750, 0.0
      %v756 = vmul.f32 %v677, 0.2
      %v757 = vmul.f32 %v679, 0.2
      %v758 = vmul.f32 %v748, 0.2
      %v759 = vmul.f32 %v750, 0.2
      %v760 = vsel %vm752, %v677, %v756
      %v761 = vsel %vm753, %v679, %v757
      %v762 = vsel %vm754, %v748, %v758
      %v763 = vsel %vm755, %v750, %v759
      %764 = vst [vmem:[%s177] sm:$0xff] %v760
      %765 = vst [vmem:[%s177 + $0x8] sm:$0xff] %v761
      %s766 = scalar_lea.vmem %s177, 16
      %767 = vst [vmem:[%s766] sm:$0xff] %v762
      %768 = vst [vmem:[%s766 + $0x8] sm:$0xff] %v763
      %s769 = smul.u32 2, %s14
      %p770 = scmp.lt.s32.totalorder %s769, 3
      %s771 = scalar_select %p770, %s769, 3
      %s772 = smul.addr %s771, 2
      %s773 = smul.addr %s772, 8
      %s774 = scalar_lea.vmem %s3, %s773
      // Predicated region
      $region33: #{conv_block_forward.1} parent=31 // pred_check
        %p775 = pneg %p100
      $region34: #{conv_block_forward.1} parent=31 // pred_check_branch
        %777 = sbr.rel (%p775) target = $region36
      $region35: #{conv_block_forward.1} parent=31 // pred_region
        %s778 = smul.u32 2, %s14
      $region36: #{conv_block_forward.1} parent=31 // pred_fallthru
        _
    $region32: #{conv_block_forward.1} parent=5 // pred_fallthru
      _
    %p779 = scmp.le.s32.totalorder 2, %s9
    // Predicated region
    $region37: #{conv_block_forward.1} parent=5 // pred_check
      %p780 = pneg %p779
    $region38: #{conv_block_forward.1} parent=5 // pred_check_branch
      %782 = sbr.rel (%p780) target = $region40
    $region39: #{conv_block_forward.1} parent=5 // pred_region
      %s783 = ssub.s32 %s9, 2
      // Predicated region
      $region41: #{conv_block_forward.1} parent=39 // pred_check
        %p784 = pneg %p106
      $region42: #{conv_block_forward.1} parent=39 // pred_check_branch
        %786 = sbr.rel (%p784) target = $region44
      $region43: #{conv_block_forward.1} parent=39 // pred_region
        %s787 = smul.u32 2, %s15
        %p788 = scmp.lt.s32.totalorder %s787, 3
        %s789 = scalar_select %p788, %s787, 3
        %s790 = smul.addr %s789, 2
        %s791 = smul.addr %s790, 8
        %s792 = scalar_lea.vmem %s3, %s791
      $region44: #{conv_block_forward.1} parent=39 // pred_fallthru
        _
    $region40: #{conv_block_forward.1} parent=5 // pred_fallthru
      _
  $region6: #{conv_block_forward.1} parent=0 // loop_footer
    %s13 = sadd.s32 1, %s9
  $region7: #{conv_block_forward.1} parent=0 // loop_footer_branch
    %8 = sbr.rel target = $region3
  $region8: #{conv_block_forward.1} parent=0 // loop_exit
    _

</llo_original>
